<compile_context>
chip_gen: v7x
topology: tpu7x:2x2x1
jax: 0.10.0
libtpu: 0.0.40
codegen_flags: <defaults>
</compile_context>

<pallas_src>
import math

import jax
import jax.numpy as jnp
from jax.experimental import pallas as pl
from jax.experimental.pallas import tpu as pltpu

HIDDEN = 128


def _round_up(x, m):
    return ((x + m - 1) // m) * m


def _policy_kernel(x_ref, w1_ref, b12_ref, w2_ref, wm_ref, ws_ref, bh_ref,
                   mean_ref, log_std_ref):
    x = x_ref[...]                                              # [TB, S]
    b12 = b12_ref[...]                                          # [2, 128]

    # layer1 + ReLU (MXU matmul, f32 accumulate)
    h1 = jnp.dot(x, w1_ref[...], preferred_element_type=jnp.float32)
    h1 = jnp.maximum(h1 + b12[0:1, :], 0.0)                     # [TB, 128]

    # layer2 + ReLU
    h2 = jnp.dot(h1, w2_ref[...], preferred_element_type=jnp.float32)
    h2 = jnp.maximum(h2 + b12[1:2, :], 0.0)                     # [TB, 128]

    bh = bh_ref[...]                                            # [2, A]: row0 = bm, row1 = bs - 1

    # mean head: narrow matmul + bias, stored directly (no wrapper slice).
    mean = jnp.dot(h2, wm_ref[...], preferred_element_type=jnp.float32) + bh[0:1, :]
    mean_ref[...] = mean.astype(mean_ref.dtype)

    # log_std head: the "-1" offset is pre-folded into bh[1]; clamp is 2 VPU ops.
    ls = jnp.dot(h2, ws_ref[...], preferred_element_type=jnp.float32) + bh[1:2, :]
    log_std_ref[...] = jnp.minimum(jnp.maximum(ls, -20.0), 1.0).astype(log_std_ref.dtype)


def _choose_batch_tile(B):
    """Batch tile: multiple of 8, >= 2 grid steps when B > 8, capped at 1024."""
    if B <= 8:
        return _round_up(max(B, 1), 8)
    return min(1024, _round_up(pl.cdiv(B, 2), 8))


def policy_net_forward(state, packed, action_dim):
    """state: [B, state_dim] f32; packed: dict from pack_policy_params.

    Returns (mean, log_std), each [B, action_dim] f32.
    """
    B, state_dim = state.shape

    tb = _choose_batch_tile(B)
    b_pad = _round_up(B, tb)
    if b_pad != B:  # only for odd batch sizes; power-of-two B never pads
        state = jnp.pad(state, ((0, b_pad - B), (0, 0)))
    grid = (b_pad // tb,)

    const = lambda i: (0, 0)   # weights/biases stay resident across the grid.

    mean, log_std = pl.pallas_call(
        _policy_kernel,
        out_shape=(
            jax.ShapeDtypeStruct((b_pad, action_dim), jnp.float32),
            jax.ShapeDtypeStruct((b_pad, action_dim), jnp.float32),
        ),
        grid=grid,
        in_specs=[
            pl.BlockSpec((tb, state_dim), lambda i: (i, 0)),        # state tile
            pl.BlockSpec((state_dim, HIDDEN), const),               # w1
            pl.BlockSpec((2, HIDDEN), const),                       # b1/b2 packed
            pl.BlockSpec((HIDDEN, HIDDEN), const),                  # w2
            pl.BlockSpec((HIDDEN, action_dim), const),              # mean head W
            pl.BlockSpec((HIDDEN, action_dim), const),              # std head W
            pl.BlockSpec((2, action_dim), const),                   # [bm; bs - 1]
        ],
        out_specs=(
            pl.BlockSpec((tb, action_dim), lambda i: (i, 0)),       # mean
            pl.BlockSpec((tb, action_dim), lambda i: (i, 0)),       # log_std
        ),
        compiler_params=pltpu.CompilerParams(
            dimension_semantics=("parallel",)),
    )(
        state,
        packed["w1"], packed["b12"], packed["w2"],
        packed["wm"], packed["ws"], packed["b_heads"],
    )

    if b_pad != B:
        mean = mean[:B]
        log_std = log_std[:B]
    return mean, log_std


def init_policy_params(key, state_dim, action_dim, normal=1e-4):
    """Deterministic init matching the module's __init__ conventions.

    layer1 / layer2: PyTorch default Linear init  U(-1/sqrt(fan_in), 1/sqrt(fan_in))
    mean_layer / std_layer: U(-normal, normal) for both weight and bias.
    Weights stored as [in, out] (transposed vs nn.Linear) so the kernel does x @ W.
    """
    ks = jax.random.split(key, 8)

    def u(k, shape, bound):
        return jax.random.uniform(k, shape, jnp.float32, -bound, bound)

    b1w = 1.0 / math.sqrt(state_dim)
    b2w = 1.0 / math.sqrt(HIDDEN)
    return {
        "w1": u(ks[0], (state_dim, HIDDEN), b1w),
        "b1": u(ks[1], (1, HIDDEN), b1w),
        "w2": u(ks[2], (HIDDEN, HIDDEN), b2w),
        "b2": u(ks[3], (1, HIDDEN), b2w),
        "wm": u(ks[4], (HIDDEN, action_dim), normal),
        "bm": u(ks[5], (1, action_dim), normal),
        "ws": u(ks[6], (HIDDEN, action_dim), normal),
        "bs": u(ks[7], (1, action_dim), normal),
    }


def pack_policy_params(params):
    """One-time packing of raw params into the kernel layout.

    b12     : [2, 128]       row 0 = b1, row 1 = b2
    b_heads : [2, action_dim] row 0 = bm, row 1 = bs - 1  (log_std offset folded in)
    """
    return {
        "w1": params["w1"],
        "b12": jnp.concatenate([params["b1"], params["b2"]], axis=0),
        "w2": params["w2"],
        "wm": params["wm"],
        "ws": params["ws"],
        "b_heads": jnp.concatenate([params["bm"], params["bs"] - 1.0], axis=0),
    }


if __name__ == "__main__":
    key = jax.random.PRNGKey(0)
    k_param, k_state = jax.random.split(key)

    batch = 8
    state_dim = 16
    action_dim = 4

    params = init_policy_params(k_param, state_dim, action_dim)
    packed = pack_policy_params(params)
    state = jax.random.normal(k_state, (batch, state_dim), jnp.float32)

    fwd = jax.jit(policy_net_forward, static_argnames=("action_dim",))
    mean, log_std = fwd(state, packed, action_dim=action_dim)
    jax.block_until_ready((mean, log_std))

    # Pure-JAX reference check of the same forward.
    h1 = jnp.maximum(state @ params["w1"] + params["b1"], 0.0)
    h2 = jnp.maximum(h1 @ params["w2"] + params["b2"], 0.0)
    mean_ref = h2 @ params["wm"] + params["bm"]
    log_std_ref = jnp.clip(h2 @ params["ws"] + params["bs"] - 1.0, -20.0, 1.0)

    assert mean.shape == (batch, action_dim) and log_std.shape == (batch, action_dim)
    assert jnp.allclose(mean, mean_ref, atol=1e-5, rtol=1e-5)
    assert jnp.allclose(log_std, log_std_ref, atol=1e-5, rtol=1e-5)

    print("KERNEL_OK")
</pallas_src>

<mosaic_0001>
module attributes {stable_mosaic.version = 11 : i64} {
  func.func @_policy_kernel(%arg0: i32, %arg1: memref<8x16xf32, #tpu.memory_space<vmem>>, %arg2: memref<16x128xf32, #tpu.memory_space<vmem>>, %arg3: memref<2x128xf32, #tpu.memory_space<vmem>>, %arg4: memref<128x128xf32, #tpu.memory_space<vmem>>, %arg5: memref<128x4xf32, #tpu.memory_space<vmem>>, %arg6: memref<128x4xf32, #tpu.memory_space<vmem>>, %arg7: memref<2x4xf32, #tpu.memory_space<vmem>>, %arg8: memref<8x4xf32, #tpu.memory_space<vmem>>, %arg9: memref<8x4xf32, #tpu.memory_space<vmem>>) attributes {dimension_semantics = [#tpu.dimension_semantics<parallel>], iteration_bounds = array<i64: 1>, scalar_prefetch = 0 : i64, scratch_operands = 0 : i64, tpu.core_type = #tpu.core_type<tc>, window_params = [{transform_indices = @transform_0, window_bounds = array<i64: 8, 16>}, {pipeline_mode = #tpu.pipeline_mode<synchronous>, transform_indices = @transform_1, window_bounds = array<i64: 16, 128>}, {pipeline_mode = #tpu.pipeline_mode<synchronous>, transform_indices = @transform_2, window_bounds = array<i64: 2, 128>}, {pipeline_mode = #tpu.pipeline_mode<synchronous>, transform_indices = @transform_3, window_bounds = array<i64: 128, 128>}, {pipeline_mode = #tpu.pipeline_mode<synchronous>, transform_indices = @transform_4, window_bounds = array<i64: 128, 4>}, {pipeline_mode = #tpu.pipeline_mode<synchronous>, transform_indices = @transform_5, window_bounds = array<i64: 128, 4>}, {pipeline_mode = #tpu.pipeline_mode<synchronous>, transform_indices = @transform_6, window_bounds = array<i64: 2, 4>}, {transform_indices = @transform_7, window_bounds = array<i64: 8, 4>}, {transform_indices = @transform_8, window_bounds = array<i64: 8, 4>}]} {
    %c0 = arith.constant 0 : index
    %c0_0 = arith.constant 0 : index
    %0 = vector.load %arg1[%c0, %c0_0] : memref<8x16xf32, #tpu.memory_space<vmem>>, vector<8x16xf32>
    %c0_1 = arith.constant 0 : index
    %c0_2 = arith.constant 0 : index
    %1 = vector.load %arg3[%c0_1, %c0_2] : memref<2x128xf32, #tpu.memory_space<vmem>>, vector<2x128xf32>
    %c0_3 = arith.constant 0 : index
    %c0_4 = arith.constant 0 : index
    %2 = vector.load %arg2[%c0_3, %c0_4] : memref<16x128xf32, #tpu.memory_space<vmem>>, vector<16x128xf32>
    %cst = arith.constant dense<0.000000e+00> : vector<8x128xf32>
    %3 = tpu.matmul %0, %2, %cst {dimension_numbers = #tpu.dot_dimension_numbers<[1], [0], [0], [1], [0, 0, 1, 1], [], []>} : vector<8x16xf32>, vector<16x128xf32>, vector<8x128xf32> -> vector<8x128xf32>
    %4 = vector.extract_strided_slice %1 {offsets = [0, 0], sizes = [1, 128], strides = [1, 1]} : vector<2x128xf32> to vector<1x128xf32>
    %5 = vector.broadcast %4 : vector<1x128xf32> to vector<8x128xf32>
    %6 = arith.addf %3, %5 : vector<8x128xf32>
    %cst_5 = arith.constant 0.000000e+00 : f32
    %7 = vector.broadcast %cst_5 : f32 to vector<8x128xf32>
    %8 = arith.maximumf %6, %7 : vector<8x128xf32>
    %c0_6 = arith.constant 0 : index
    %c0_7 = arith.constant 0 : index
    %9 = vector.load %arg4[%c0_6, %c0_7] : memref<128x128xf32, #tpu.memory_space<vmem>>, vector<128x128xf32>
    %cst_8 = arith.constant dense<0.000000e+00> : vector<8x128xf32>
    %10 = tpu.matmul %8, %9, %cst_8 {dimension_numbers = #tpu.dot_dimension_numbers<[1], [0], [0], [1], [0, 0, 1, 1], [], []>} : vector<8x128xf32>, vector<128x128xf32>, vector<8x128xf32> -> vector<8x128xf32>
    %11 = vector.extract_strided_slice %1 {offsets = [1, 0], sizes = [1, 128], strides = [1, 1]} : vector<2x128xf32> to vector<1x128xf32>
    %12 = vector.broadcast %11 : vector<1x128xf32> to vector<8x128xf32>
    %13 = arith.addf %10, %12 : vector<8x128xf32>
    %cst_9 = arith.constant 0.000000e+00 : f32
    %14 = vector.broadcast %cst_9 : f32 to vector<8x128xf32>
    %15 = arith.maximumf %13, %14 : vector<8x128xf32>
    %c0_10 = arith.constant 0 : index
    %c0_11 = arith.constant 0 : index
    %16 = vector.load %arg7[%c0_10, %c0_11] : memref<2x4xf32, #tpu.memory_space<vmem>>, vector<2x4xf32>
    %c0_12 = arith.constant 0 : index
    %c0_13 = arith.constant 0 : index
    %17 = vector.load %arg5[%c0_12, %c0_13] : memref<128x4xf32, #tpu.memory_space<vmem>>, vector<128x4xf32>
    %cst_14 = arith.constant dense<0.000000e+00> : vector<8x4xf32>
    %18 = tpu.matmul %15, %17, %cst_14 {dimension_numbers = #tpu.dot_dimension_numbers<[1], [0], [0], [1], [0, 0, 1, 1], [], []>} : vector<8x128xf32>, vector<128x4xf32>, vector<8x4xf32> -> vector<8x4xf32>
    %19 = vector.extract_strided_slice %16 {offsets = [0, 0], sizes = [1, 4], strides = [1, 1]} : vector<2x4xf32> to vector<1x4xf32>
    %20 = vector.broadcast %19 : vector<1x4xf32> to vector<8x4xf32>
    %21 = arith.addf %18, %20 : vector<8x4xf32>
    %c0_15 = arith.constant 0 : index
    %c0_16 = arith.constant 0 : index
    %22 = vector.load %arg8[%c0_15, %c0_16] : memref<8x4xf32, #tpu.memory_space<vmem>>, vector<8x4xf32>
    tpu.vector_store %arg8[%c0_15, %c0_16], %21 {strides = array<i32>} : memref<8x4xf32, #tpu.memory_space<vmem>>, vector<8x4xf32>,
    %c0_17 = arith.constant 0 : index
    %c0_18 = arith.constant 0 : index
    %23 = vector.load %arg6[%c0_17, %c0_18] : memref<128x4xf32, #tpu.memory_space<vmem>>, vector<128x4xf32>
    %cst_19 = arith.constant dense<0.000000e+00> : vector<8x4xf32>
    %24 = tpu.matmul %15, %23, %cst_19 {dimension_numbers = #tpu.dot_dimension_numbers<[1], [0], [0], [1], [0, 0, 1, 1], [], []>} : vector<8x128xf32>, vector<128x4xf32>, vector<8x4xf32> -> vector<8x4xf32>
    %25 = vector.extract_strided_slice %16 {offsets = [1, 0], sizes = [1, 4], strides = [1, 1]} : vector<2x4xf32> to vector<1x4xf32>
    %26 = vector.broadcast %25 : vector<1x4xf32> to vector<8x4xf32>
    %27 = arith.addf %24, %26 : vector<8x4xf32>
    %cst_20 = arith.constant -2.000000e+01 : f32
    %28 = vector.broadcast %cst_20 : f32 to vector<8x4xf32>
    %29 = arith.maximumf %27, %28 : vector<8x4xf32>
    %cst_21 = arith.constant 1.000000e+00 : f32
    %30 = vector.broadcast %cst_21 : f32 to vector<8x4xf32>
    %31 = arith.minimumf %29, %30 : vector<8x4xf32>
    %c0_22 = arith.constant 0 : index
    %c0_23 = arith.constant 0 : index
    %32 = vector.load %arg9[%c0_22, %c0_23] : memref<8x4xf32, #tpu.memory_space<vmem>>, vector<8x4xf32>
    tpu.vector_store %arg9[%c0_22, %c0_23], %31 {strides = array<i32>} : memref<8x4xf32, #tpu.memory_space<vmem>>, vector<8x4xf32>,
    return
  }
  func.func @transform_0(%arg0: i32) -> (i32, i32) {
    %c0_i32 = arith.constant 0 : i32
    %c0_i32_0 = arith.constant 0 : i32
    return %arg0, %c0_i32 : i32, i32
  }
  func.func @transform_1(%arg0: i32) -> (i32, i32) {
    %c0_i32 = arith.constant 0 : i32
    %c0_i32_0 = arith.constant 0 : i32
    %c0_i32_1 = arith.constant 0 : i32
    return %c0_i32, %c0_i32_0 : i32, i32
  }
  func.func @transform_2(%arg0: i32) -> (i32, i32) {
    %c0_i32 = arith.constant 0 : i32
    %c0_i32_0 = arith.constant 0 : i32
    %c0_i32_1 = arith.constant 0 : i32
    return %c0_i32, %c0_i32_0 : i32, i32
  }
  func.func @transform_3(%arg0: i32) -> (i32, i32) {
    %c0_i32 = arith.constant 0 : i32
    %c0_i32_0 = arith.constant 0 : i32
    %c0_i32_1 = arith.constant 0 : i32
    return %c0_i32, %c0_i32_0 : i32, i32
  }
  func.func @transform_4(%arg0: i32) -> (i32, i32) {
    %c0_i32 = arith.constant 0 : i32
    %c0_i32_0 = arith.constant 0 : i32
    %c0_i32_1 = arith.constant 0 : i32
    return %c0_i32, %c0_i32_0 : i32, i32
  }
  func.func @transform_5(%arg0: i32) -> (i32, i32) {
    %c0_i32 = arith.constant 0 : i32
    %c0_i32_0 = arith.constant 0 : i32
    %c0_i32_1 = arith.constant 0 : i32
    return %c0_i32, %c0_i32_0 : i32, i32
  }
  func.func @transform_6(%arg0: i32) -> (i32, i32) {
    %c0_i32 = arith.constant 0 : i32
    %c0_i32_0 = arith.constant 0 : i32
    %c0_i32_1 = arith.constant 0 : i32
    return %c0_i32, %c0_i32_0 : i32, i32
  }
  func.func @transform_7(%arg0: i32) -> (i32, i32) {
    %c0_i32 = arith.constant 0 : i32
    %c0_i32_0 = arith.constant 0 : i32
    return %arg0, %c0_i32 : i32, i32
  }
  func.func @transform_8(%arg0: i32) -> (i32, i32) {
    %c0_i32 = arith.constant 0 : i32
    %c0_i32_0 = arith.constant 0 : i32
    return %arg0, %c0_i32 : i32, i32
  }
}

</mosaic_0001>

<llo_original>
// kernel: policy_net_forward.1
$region0: #{policy_net_forward.1}
  #allocation0 [shape = 'u32[]', space=smem, size = 0x4, offset = 0x4, fixed_abs, tag = 'smem constant byte address 0x4 - core index']
  #allocation1 [shape = 'u32[144,128]{1,0:T(1,128)}', space=vmem, size = 0x12000, scoped, tag = 'internal scratch']
  %s0 = inlined_call_operand.vmem [shape: f32[8,16], index: 0, kind: input, shape index: {}]
  %s1 = inlined_call_operand.vmem [shape: f32[16,128], index: 1, kind: input, shape index: {}]
  %s2 = inlined_call_operand.vmem [shape: f32[2,128], index: 2, kind: input, shape index: {}]
  %s3 = inlined_call_operand.vmem [shape: f32[128,128], index: 3, kind: input, shape index: {}]
  %s4 = inlined_call_operand.vmem [shape: f32[128,4], index: 4, kind: input, shape index: {}]
  %s5 = inlined_call_operand.vmem [shape: f32[128,4], index: 5, kind: input, shape index: {}]
  %s6 = inlined_call_operand.vmem [shape: f32[2,4], index: 6, kind: input, shape index: {}]
  %s7 = inlined_call_operand.vmem [shape: f32[8,4], index: 7, kind: output, shape index: {0}]
  %s8 = inlined_call_operand.vmem [shape: f32[8,4], index: 8, kind: output, shape index: {1}]
  %9 = xla_tuple %s7, %s8
  %s10 = sld [smem:[#allocation0]]
  $region46: #{policy_net_forward.1} parent=0
    _
  %s12 = ssub.s32 1, %s10
  %s13 = scalar_select 0, %s12, %s10
  // Predicated region
  $region2: #{policy_net_forward.1} parent=0 // pred_check
    _
  $region3: #{policy_net_forward.1} parent=0 // pred_check_branch
    %15 = sbr.rel (0) target = $region5
  $region4: #{policy_net_forward.1} parent=0 // pred_region
    _
  $region5: #{policy_net_forward.1} parent=0 // pred_fallthru
    _
  // Predicated region
  $region6: #{policy_net_forward.1} parent=0 // pred_check
    _
  $region7: #{policy_net_forward.1} parent=0 // pred_check_branch
    %17 = sbr.rel (0) target = $region9
  $region8: #{policy_net_forward.1} parent=0 // pred_region
    _
  $region9: #{policy_net_forward.1} parent=0 // pred_fallthru
    _
  // Predicated region
  $region10: #{policy_net_forward.1} parent=0 // pred_check
    _
  $region11: #{policy_net_forward.1} parent=0 // pred_check_branch
    %19 = sbr.rel (0) target = $region13
  $region12: #{policy_net_forward.1} parent=0 // pred_region
    _
  $region13: #{policy_net_forward.1} parent=0 // pred_fallthru
    _
  // Predicated region
  $region14: #{policy_net_forward.1} parent=0 // pred_check
    _
  $region15: #{policy_net_forward.1} parent=0 // pred_check_branch
    %21 = sbr.rel (0) target = $region17
  $region16: #{policy_net_forward.1} parent=0 // pred_region
    _
  $region17: #{policy_net_forward.1} parent=0 // pred_fallthru
    _
  // Predicated region
  $region18: #{policy_net_forward.1} parent=0 // pred_check
    _
  $region19: #{policy_net_forward.1} parent=0 // pred_check_branch
    %23 = sbr.rel (0) target = $region21
  $region20: #{policy_net_forward.1} parent=0 // pred_region
    _
  $region21: #{policy_net_forward.1} parent=0 // pred_fallthru
    _
  // Predicated region
  $region22: #{policy_net_forward.1} parent=0 // pred_check
    _
  $region23: #{policy_net_forward.1} parent=0 // pred_check_branch
    %25 = sbr.rel (0) target = $region25
  $region24: #{policy_net_forward.1} parent=0 // pred_region
    _
  $region25: #{policy_net_forward.1} parent=0 // pred_fallthru
    _
  // Predicated region
  $region26: #{policy_net_forward.1} parent=0 // pred_check
    _
  $region27: #{policy_net_forward.1} parent=0 // pred_check_branch
    %27 = sbr.rel (0) target = $region29
  $region28: #{policy_net_forward.1} parent=0 // pred_region
    _
  $region29: #{policy_net_forward.1} parent=0 // pred_fallthru
    _
  %v28 = vld [vmem:[%s0] sm:$0xff]
  %v29 = vld [vmem:[%s2] sm:$0x3]
  %v30 = vld [vmem:[%s1] sm:$0xff]
  %v31 = vld [vmem:[%s1 + $0x8] sm:$0xff]
  %v32 = vlaneseq
  %v33 = vshrl.u32 %v32, 7
  %v34 = vsub.s32 0, %v33
  %v35 = vrot.slane %v29, %v34
  %vm36 = vcmask 130048
  %v38 = vsel %vm36, %v28, 0
  %40 = vmatprep.subr.mxu0 0.0
  %41 = vmatpush1.msra.mxu0 %v30
  %42 = vmatprep.subr.mxu0 0.0
  %43 = vmatpush1.msra.mxu0 %v31
  %44 = vmatprep.subr.mxu0 0.0
  %45 = vmatpush1.msra.mxu0 0.0
  %46 = vmatprep.subr.mxu0 0.0
  %47 = vmatpush1.msra.mxu0 0.0
  %48 = vmatprep.subr.mxu0 0.0
  %49 = vmatpush1.msra.mxu0 0.0
  %50 = vmatprep.subr.mxu0 0.0
  %51 = vmatpush1.msra.mxu0 0.0
  %52 = vmatprep.subr.mxu0 0.0
  %53 = vmatpush1.msra.mxu0 0.0
  %54 = vmatprep.subr.mxu0 0.0
  %55 = vmatpush1.msra.mxu0 0.0
  %56 = vmatprep.subr.mxu0 0.0
  %57 = vmatpush1.msra.mxu0 0.0
  %58 = vmatprep.subr.mxu0 0.0
  %59 = vmatpush1.msra.mxu0 0.0
  %60 = vmatprep.subr.mxu0 0.0
  %61 = vmatpush1.msra.mxu0 0.0
  %62 = vmatprep.subr.mxu0 0.0
  %63 = vmatpush1.msra.mxu0 0.0
  %64 = vmatprep.subr.mxu0 0.0
  %65 = vmatpush1.msra.mxu0 0.0
  %66 = vmatprep.subr.mxu0 0.0
  %67 = vmatpush1.msra.mxu0 0.0
  %68 = vmatprep.subr.mxu0 0.0
  %69 = vmatpush1.msra.mxu0 0.0
  %70 = vmatprep.subr.mxu0 0.0
  %71 = vmatpush1.msra.mxu0 0.0
  %72 = vmatprep.subr.mxu0 0.0
  %73 = vmatpush1.msra.mxu0 0.0
  %74 = vmatprep.subr.mxu0 0.0
  %75 = vmatpush1.msra.mxu0 0.0
  %76 = vmatprep.subr.mxu0 0.0
  %77 = vmatpush1.msra.mxu0 0.0
  %78 = vmatprep.subr.mxu0 0.0
  %79 = vmatpush1.msra.mxu0 0.0
  %80 = vmatprep.subr.mxu0 0.0
  %81 = vmatpush1.msra.mxu0 0.0
  %82 = vmatprep.subr.mxu0 0.0
  %83 = vmatpush1.msra.mxu0 0.0
  %84 = vmatprep.subr.mxu0 0.0
  %85 = vmatpush1.msra.mxu0 0.0
  %86 = vmatprep.subr.mxu0 0.0
  %87 = vmatpush1.msra.mxu0 0.0
  %88 = vmatprep.subr.mxu0 0.0
  %89 = vmatpush1.msra.mxu0 0.0
  %90 = vmatprep.subr.mxu0 0.0
  %91 = vmatpush1.msra.mxu0 0.0
  %92 = vmatprep.subr.mxu0 0.0
  %93 = vmatpush1.msra.mxu0 0.0
  %94 = vmatprep.subr.mxu0 0.0
  %95 = vmatpush1.msra.mxu0 0.0
  %96 = vmatprep.subr.mxu0 0.0
  %97 = vmatpush1.msra.mxu0 0.0
  %98 = vmatprep.subr.mxu0 0.0
  %99 = vmatpush1.msra.mxu0 0.0
  %100 = vmatprep.subr.mxu0 0.0
  %101 = vmatpush1.msra.mxu0 0.0
  %102 = vmatprep.subr.mxu0 0.0
  %103 = vmatpush1.msra.mxu0 0.0
  %104 = vmatprep.mubr.f32.mxu0 0.0
  %105 = vmatmul.mubr.f32.gmra.mrb[0].mxu0 %v38
  %v106 = vpop.f32.mrb[0].mxu0
  %v107 = vadd.f32 %v35, %v106
  %v108 = vpop.f32.mrb[0].mxu0
  %109 = vdwg.mxu0
  %v110 = vmax.f32 %v107, 0.0
  %v111 = vld [vmem:[%s3] sm:$0xff]
  %v112 = vld [vmem:[%s3 + $0x8] sm:$0xff]
  %v113 = vld [vmem:[%s3 + $0x10] sm:$0xff]
  %v114 = vld [vmem:[%s3 + $0x18] sm:$0xff]
  %v115 = vld [vmem:[%s3 + $0x20] sm:$0xff]
  %v116 = vld [vmem:[%s3 + $0x28] sm:$0xff]
  %v117 = vld [vmem:[%s3 + $0x30] sm:$0xff]
  %v118 = vld [vmem:[%s3 + $0x38] sm:$0xff]
  %v119 = vld [vmem:[%s3 + $0x40] sm:$0xff]
  %v120 = vld [vmem:[%s3 + $0x48] sm:$0xff]
  %v121 = vld [vmem:[%s3 + $0x50] sm:$0xff]
  %v122 = vld [vmem:[%s3 + $0x58] sm:$0xff]
  %v123 = vld [vmem:[%s3 + $0x60] sm:$0xff]
  %v124 = vld [vmem:[%s3 + $0x68] sm:$0xff]
  %v125 = vld [vmem:[%s3 + $0x70] sm:$0xff]
  %v126 = vld [vmem:[%s3 + $0x78] sm:$0xff]
  %v127 = vlaneseq
  %v128 = vshrl.u32 %v127, 7
  %v129 = vsub.s32 1, %v128
  %v130 = vrot.slane %v29, %v129
  %131 = vmatprep.subr.mxu0 0.0
  %132 = vmatpush1.msra.mxu0 %v111
  %133 = vmatprep.subr.mxu0 0.0
  %134 = vmatpush1.msra.mxu0 %v112
  %135 = vmatprep.subr.mxu0 0.0
  %136 = vmatpush1.msra.mxu0 %v113
  %137 = vmatprep.subr.mxu0 0.0
  %138 = vmatpush1.msra.mxu0 %v114
  %139 = vmatprep.subr.mxu0 0.0
  %140 = vmatpush1.msra.mxu0 %v115
  %141 = vmatprep.subr.mxu0 0.0
  %142 = vmatpush1.msra.mxu0 %v116
  %143 = vmatprep.subr.mxu0 0.0
  %144 = vmatpush1.msra.mxu0 %v117
  %145 = vmatprep.subr.mxu0 0.0
  %146 = vmatpush1.msra.mxu0 %v118
  %147 = vmatprep.subr.mxu0 0.0
  %148 = vmatpush1.msra.mxu0 %v119
  %149 = vmatprep.subr.mxu0 0.0
  %150 = vmatpush1.msra.mxu0 %v120
  %151 = vmatprep.subr.mxu0 0.0
  %152 = vmatpush1.msra.mxu0 %v121
  %153 = vmatprep.subr.mxu0 0.0
  %154 = vmatpush1.msra.mxu0 %v122
  %155 = vmatprep.subr.mxu0 0.0
  %156 = vmatpush1.msra.mxu0 %v123
  %157 = vmatprep.subr.mxu0 0.0
  %158 = vmatpush1.msra.mxu0 %v124
  %159 = vmatprep.subr.mxu0 0.0
  %160 = vmatpush1.msra.mxu0 %v125
  %161 = vmatprep.subr.mxu0 0.0
  %162 = vmatpush1.msra.mxu0 %v126
  %163 = vmatprep.subr.mxu0 0.0
  %164 = vmatpush1.msra.mxu0 0.0
  %165 = vmatprep.subr.mxu0 0.0
  %166 = vmatpush1.msra.mxu0 0.0
  %167 = vmatprep.subr.mxu0 0.0
  %168 = vmatpush1.msra.mxu0 0.0
  %169 = vmatprep.subr.mxu0 0.0
  %170 = vmatpush1.msra.mxu0 0.0
  %171 = vmatprep.subr.mxu0 0.0
  %172 = vmatpush1.msra.mxu0 0.0
  %173 = vmatprep.subr.mxu0 0.0
  %174 = vmatpush1.msra.mxu0 0.0
  %175 = vmatprep.subr.mxu0 0.0
  %176 = vmatpush1.msra.mxu0 0.0
  %177 = vmatprep.subr.mxu0 0.0
  %178 = vmatpush1.msra.mxu0 0.0
  %179 = vmatprep.subr.mxu0 0.0
  %180 = vmatpush1.msra.mxu0 0.0
  %181 = vmatprep.subr.mxu0 0.0
  %182 = vmatpush1.msra.mxu0 0.0
  %183 = vmatprep.subr.mxu0 0.0
  %184 = vmatpush1.msra.mxu0 0.0
  %185 = vmatprep.subr.mxu0 0.0
  %186 = vmatpush1.msra.mxu0 0.0
  %187 = vmatprep.subr.mxu0 0.0
  %188 = vmatpush1.msra.mxu0 0.0
  %189 = vmatprep.subr.mxu0 0.0
  %190 = vmatpush1.msra.mxu0 0.0
  %191 = vmatprep.subr.mxu0 0.0
  %192 = vmatpush1.msra.mxu0 0.0
  %193 = vmatprep.subr.mxu0 0.0
  %194 = vmatpush1.msra.mxu0 0.0
  %195 = vmatprep.mubr.f32.mxu0 0.0
  %196 = vmatmul.mubr.f32.gmra.mrb[0].mxu0 %v110
  %v197 = vpop.f32.mrb[0].mxu0
  %v198 = vadd.f32 %v130, %v197
  %v199 = vpop.f32.mrb[0].mxu0
  %200 = vdwg.mxu0
  %v201 = vmax.f32 %v198, 0.0
  %v202 = vld [vmem:[%s6] sm:$0x3]
  %v203 = vld [vmem:[%s4] sm:$0xff]
  %v204 = vld [vmem:[%s4 + $0x8] sm:$0xff]
  %v205 = vld [vmem:[%s4 + $0x10] sm:$0xff]
  %v206 = vld [vmem:[%s4 + $0x18] sm:$0xff]
  %v207 = vld [vmem:[%s4 + $0x20] sm:$0xff]
  %v208 = vld [vmem:[%s4 + $0x28] sm:$0xff]
  %v209 = vld [vmem:[%s4 + $0x30] sm:$0xff]
  %v210 = vld [vmem:[%s4 + $0x38] sm:$0xff]
  %v211 = vld [vmem:[%s4 + $0x40] sm:$0xff]
  %v212 = vld [vmem:[%s4 + $0x48] sm:$0xff]
  %v213 = vld [vmem:[%s4 + $0x50] sm:$0xff]
  %v214 = vld [vmem:[%s4 + $0x58] sm:$0xff]
  %v215 = vld [vmem:[%s4 + $0x60] sm:$0xff]
  %v216 = vld [vmem:[%s4 + $0x68] sm:$0xff]
  %v217 = vld [vmem:[%s4 + $0x70] sm:$0xff]
  %v218 = vld [vmem:[%s4 + $0x78] sm:$0xff]
  %v219 = vlaneseq
  %v220 = vshrl.u32 %v219, 7
  %v221 = vsub.s32 0, %v220
  %v222 = vrot.slane %v202, %v221
  %223 = vmatprep.subr.mxu0 0.0
  %224 = vmatpush1.msra.mxu0 %v203
  %225 = vmatprep.subr.mxu0 0.0
  %226 = vmatpush1.msra.mxu0 %v204
  %227 = vmatprep.subr.mxu0 0.0
  %228 = vmatpush1.msra.mxu0 %v205
  %229 = vmatprep.subr.mxu0 0.0
  %230 = vmatpush1.msra.mxu0 %v206
  %231 = vmatprep.subr.mxu0 0.0
  %232 = vmatpush1.msra.mxu0 %v207
  %233 = vmatprep.subr.mxu0 0.0
  %234 = vmatpush1.msra.mxu0 %v208
  %235 = vmatprep.subr.mxu0 0.0
  %236 = vmatpush1.msra.mxu0 %v209
  %237 = vmatprep.subr.mxu0 0.0
  %238 = vmatpush1.msra.mxu0 %v210
  %239 = vmatprep.subr.mxu0 0.0
  %240 = vmatpush1.msra.mxu0 %v211
  %241 = vmatprep.subr.mxu0 0.0
  %242 = vmatpush1.msra.mxu0 %v212
  %243 = vmatprep.subr.mxu0 0.0
  %244 = vmatpush1.msra.mxu0 %v213
  %245 = vmatprep.subr.mxu0 0.0
  %246 = vmatpush1.msra.mxu0 %v214
  %247 = vmatprep.subr.mxu0 0.0
  %248 = vmatpush1.msra.mxu0 %v215
  %249 = vmatprep.subr.mxu0 0.0
  %250 = vmatpush1.msra.mxu0 %v216
  %251 = vmatprep.subr.mxu0 0.0
  %252 = vmatpush1.msra.mxu0 %v217
  %253 = vmatprep.subr.mxu0 0.0
  %254 = vmatpush1.msra.mxu0 %v218
  %255 = vmatprep.subr.mxu0 0.0
  %256 = vmatpush1.msra.mxu0 0.0
  %257 = vmatprep.subr.mxu0 0.0
  %258 = vmatpush1.msra.mxu0 0.0
  %259 = vmatprep.subr.mxu0 0.0
  %260 = vmatpush1.msra.mxu0 0.0
  %261 = vmatprep.subr.mxu0 0.0
  %262 = vmatpush1.msra.mxu0 0.0
  %263 = vmatprep.subr.mxu0 0.0
  %264 = vmatpush1.msra.mxu0 0.0
  %265 = vmatprep.subr.mxu0 0.0
  %266 = vmatpush1.msra.mxu0 0.0
  %267 = vmatprep.subr.mxu0 0.0
  %268 = vmatpush1.msra.mxu0 0.0
  %269 = vmatprep.subr.mxu0 0.0
  %270 = vmatpush1.msra.mxu0 0.0
  %271 = vmatprep.subr.mxu0 0.0
  %272 = vmatpush1.msra.mxu0 0.0
  %273 = vmatprep.subr.mxu0 0.0
  %274 = vmatpush1.msra.mxu0 0.0
  %275 = vmatprep.subr.mxu0 0.0
  %276 = vmatpush1.msra.mxu0 0.0
  %277 = vmatprep.subr.mxu0 0.0
  %278 = vmatpush1.msra.mxu0 0.0
  %279 = vmatprep.subr.mxu0 0.0
  %280 = vmatpush1.msra.mxu0 0.0
  %281 = vmatprep.subr.mxu0 0.0
  %282 = vmatpush1.msra.mxu0 0.0
  %283 = vmatprep.subr.mxu0 0.0
  %284 = vmatpush1.msra.mxu0 0.0
  %285 = vmatprep.subr.mxu0 0.0
  %286 = vmatpush1.msra.mxu0 0.0
  %287 = vmatprep.mubr.f32.mxu0 0.0
  %288 = vmatmul.mubr.f32.gmra.mrb[0].mxu0 %v201
  %v289 = vpop.f32.mrb[0].mxu0
  %v290 = vadd.f32 %v222, %v289
  %v291 = vpop.f32.mrb[0].mxu0
  %292 = vdwg.mxu0
  %vm293 = vcmask 31744
  %294 = vst.msk [vmem:[%s7] sm:$0xff] %vm293, %v290
  %v295 = vld [vmem:[%s5] sm:$0xff]
  %v296 = vld [vmem:[%s5 + $0x8] sm:$0xff]
  %v297 = vld [vmem:[%s5 + $0x10] sm:$0xff]
  %v298 = vld [vmem:[%s5 + $0x18] sm:$0xff]
  %v299 = vld [vmem:[%s5 + $0x20] sm:$0xff]
  %v300 = vld [vmem:[%s5 + $0x28] sm:$0xff]
  %v301 = vld [vmem:[%s5 + $0x30] sm:$0xff]
  %v302 = vld [vmem:[%s5 + $0x38] sm:$0xff]
  %v303 = vld [vmem:[%s5 + $0x40] sm:$0xff]
  %v304 = vld [vmem:[%s5 + $0x48] sm:$0xff]
  %v305 = vld [vmem:[%s5 + $0x50] sm:$0xff]
  %v306 = vld [vmem:[%s5 + $0x58] sm:$0xff]
  %v307 = vld [vmem:[%s5 + $0x60] sm:$0xff]
  %v308 = vld [vmem:[%s5 + $0x68] sm:$0xff]
  %v309 = vld [vmem:[%s5 + $0x70] sm:$0xff]
  %v310 = vld [vmem:[%s5 + $0x78] sm:$0xff]
  %v311 = vlaneseq
  %v312 = vshrl.u32 %v311, 7
  %v313 = vsub.s32 1, %v312
  %v314 = vrot.slane %v202, %v313
  %315 = vmatprep.subr.mxu0 0.0
  %316 = vmatpush1.msra.mxu0 %v295
  %317 = vmatprep.subr.mxu0 0.0
  %318 = vmatpush1.msra.mxu0 %v296
  %319 = vmatprep.subr.mxu0 0.0
  %320 = vmatpush1.msra.mxu0 %v297
  %321 = vmatprep.subr.mxu0 0.0
  %322 = vmatpush1.msra.mxu0 %v298
  %323 = vmatprep.subr.mxu0 0.0
  %324 = vmatpush1.msra.mxu0 %v299
  %325 = vmatprep.subr.mxu0 0.0
  %326 = vmatpush1.msra.mxu0 %v300
  %327 = vmatprep.subr.mxu0 0.0
  %328 = vmatpush1.msra.mxu0 %v301
  %329 = vmatprep.subr.mxu0 0.0
  %330 = vmatpush1.msra.mxu0 %v302
  %331 = vmatprep.subr.mxu0 0.0
  %332 = vmatpush1.msra.mxu0 %v303
  %333 = vmatprep.subr.mxu0 0.0
  %334 = vmatpush1.msra.mxu0 %v304
  %335 = vmatprep.subr.mxu0 0.0
  %336 = vmatpush1.msra.mxu0 %v305
  %337 = vmatprep.subr.mxu0 0.0
  %338 = vmatpush1.msra.mxu0 %v306
  %339 = vmatprep.subr.mxu0 0.0
  %340 = vmatpush1.msra.mxu0 %v307
  %341 = vmatprep.subr.mxu0 0.0
  %342 = vmatpush1.msra.mxu0 %v308
  %343 = vmatprep.subr.mxu0 0.0
  %344 = vmatpush1.msra.mxu0 %v309
  %345 = vmatprep.subr.mxu0 0.0
  %346 = vmatpush1.msra.mxu0 %v310
  %347 = vmatprep.subr.mxu0 0.0
  %348 = vmatpush1.msra.mxu0 0.0
  %349 = vmatprep.subr.mxu0 0.0
  %350 = vmatpush1.msra.mxu0 0.0
  %351 = vmatprep.subr.mxu0 0.0
  %352 = vmatpush1.msra.mxu0 0.0
  %353 = vmatprep.subr.mxu0 0.0
  %354 = vmatpush1.msra.mxu0 0.0
  %355 = vmatprep.subr.mxu0 0.0
  %356 = vmatpush1.msra.mxu0 0.0
  %357 = vmatprep.subr.mxu0 0.0
  %358 = vmatpush1.msra.mxu0 0.0
  %359 = vmatprep.subr.mxu0 0.0
  %360 = vmatpush1.msra.mxu0 0.0
  %361 = vmatprep.subr.mxu0 0.0
  %362 = vmatpush1.msra.mxu0 0.0
  %363 = vmatprep.subr.mxu0 0.0
  %364 = vmatpush1.msra.mxu0 0.0
  %365 = vmatprep.subr.mxu0 0.0
  %366 = vmatpush1.msra.mxu0 0.0
  %367 = vmatprep.subr.mxu0 0.0
  %368 = vmatpush1.msra.mxu0 0.0
  %369 = vmatprep.subr.mxu0 0.0
  %370 = vmatpush1.msra.mxu0 0.0
  %371 = vmatprep.subr.mxu0 0.0
  %372 = vmatpush1.msra.mxu0 0.0
  %373 = vmatprep.subr.mxu0 0.0
  %374 = vmatpush1.msra.mxu0 0.0
  %375 = vmatprep.subr.mxu0 0.0
  %376 = vmatpush1.msra.mxu0 0.0
  %377 = vmatprep.subr.mxu0 0.0
  %378 = vmatpush1.msra.mxu0 0.0
  %379 = vmatprep.mubr.f32.mxu0 0.0
  %380 = vmatmul.mubr.f32.gmra.mrb[0].mxu0 %v201
  %v381 = vpop.f32.mrb[0].mxu0
  %v382 = vadd.f32 %v314, %v381
  %v383 = vpop.f32.mrb[0].mxu0
  %384 = vdwg.mxu0
  %v385 = vmax.f32 %v382, -20.0
  %v386 = vmin.f32 %v385, 1.0
  %387 = vst.msk [vmem:[%s8] sm:$0xff] %vm293, %v386
  // Predicated region
  $region30: #{policy_net_forward.1} parent=0 // pred_check
    _
  $region31: #{policy_net_forward.1} parent=0 // pred_check_branch
    %389 = sbr.rel (0) target = $region33
  $region32: #{policy_net_forward.1} parent=0 // pred_region
    _
  $region33: #{policy_net_forward.1} parent=0 // pred_fallthru
    _
  // Predicated region
  $region34: #{policy_net_forward.1} parent=0 // pred_check
    _
  $region35: #{policy_net_forward.1} parent=0 // pred_check_branch
    %391 = sbr.rel (0) target = $region37
  $region36: #{policy_net_forward.1} parent=0 // pred_region
    _
  $region37: #{policy_net_forward.1} parent=0 // pred_fallthru
    _
  // Predicated region
  $region38: #{policy_net_forward.1} parent=0 // pred_check
    _
  $region39: #{policy_net_forward.1} parent=0 // pred_check_branch
    %393 = sbr.rel (0) target = $region41
  $region40: #{policy_net_forward.1} parent=0 // pred_region
    _
  $region41: #{policy_net_forward.1} parent=0 // pred_fallthru
    _
  // Predicated region
  $region42: #{policy_net_forward.1} parent=0 // pred_check
    _
  $region43: #{policy_net_forward.1} parent=0 // pred_check_branch
    %395 = sbr.rel (0) target = $region45
  $region44: #{policy_net_forward.1} parent=0 // pred_region
    _
  $region45: #{policy_net_forward.1} parent=0 // pred_fallthru
    _

</llo_original>
